<compile_context>
chip_gen: v7x
topology: tpu7x:2x2x1
jax: 0.10.0
libtpu: 0.0.40
codegen_flags: <defaults>
</compile_context>

<pallas_src>
import numpy as np
import jax
import jax.numpy as jnp
from jax.experimental import pallas as pl
from jax.experimental.pallas import tpu as pltpu

# ---- SKConv hyper-parameters (small shapes consistent with the module) ----
B, C, H, W = 2, 16, 16, 8          # x is NCHW, features = C
M, G, R, STRIDE, L = 2, 2, 2, 1, 32
D = C // R                          # d = int(features / r)
DMAX = M                            # max dilation = 1 + (M - 1)
W_OUT = W + 2                       # PyTorch branch-conv output width (kW=1, pad_w=1)
WP = 16                             # padded width (multiple of 8 -> H*WP = 2*128 lanes)
HP = H + 2 * DMAX                   # zero-padded height
SP = HP * WP                        # flattened padded spatial size (320)
HW = H * WP                         # flattened output spatial size (256)


def _tap_offset(m, kh):
    """Flat padded-row offset (in lanes) of tap kh for branch m."""
    return (DMAX + (kh - 1) * (1 + m)) * WP


def _skconv_kernel(x_ref, wbig_ref, bns_ref, bnb_ref, gapw_ref,
                   wfc_ref, fcs_ref, fcb_ref, wfcs_ref, bfcs_ref, out_ref):
    nb = out_ref.shape[0]                       # batches handled in this grid step
    xb = [x_ref[b] for b in range(nb)]          # per-batch (C, SP) bf16 slabs

    # --- deduped im2col: one lane-shifted slice per UNIQUE tap offset -----------
    # offsets are {0, 16, 32, 48, 64}: only 4 need lane rotation, the centre tap
    # (off = 32) is shared between both branches.
    offs = sorted({_tap_offset(m, kh) for m in range(M) for kh in range(3)})
    slabs = {}
    for off in offs:
        parts = [xb[b][:, off:off + HW] for b in range(nb)]          # (C, HW) each
        slabs[off] = parts[0] if nb == 1 else jnp.concatenate(parts, axis=1)

    # --- per-branch fused (3-tap, grouped) conv as ONE MXU matmul each ----------
    feats = []                                   # per-branch (C, nb*HW) f32, BN+ReLU
    for m in range(M):
        xm = jnp.concatenate([slabs[_tap_offset(m, kh)] for kh in range(3)],
                             axis=0)             # (3*C, nb*HW) bf16
        f = jnp.dot(wbig_ref[m], xm, preferred_element_type=jnp.float32)
        # folded eval-mode BatchNorm + ReLU (per channel row)
        feats.append(jnp.maximum(f * bns_ref[m] + bnb_ref[m], 0.0))

    # --- feats_U + masked global-average-pool as a single matmul ----------------
    u = feats[0]
    for m in range(1, M):
        u = u + feats[m]
    s = jnp.dot(u, gapw_ref[...], preferred_element_type=jnp.float32)   # (C, nb)

    # --- fc: 1x1 conv C->D + folded BN + ReLU ------------------------------------
    z = jnp.dot(wfc_ref[...], s, preferred_element_type=jnp.float32)    # (D, nb)
    z = jnp.maximum(z * fcs_ref[...] + fcb_ref[...], 0.0)

    # --- fused per-branch fcs (one (M*C, D) matmul) + branch softmax -------------
    logits_all = (jnp.dot(wfcs_ref[...], z, preferred_element_type=jnp.float32)
                  + fcb_dummy_broadcast(bfcs_ref))                      # (M*C, nb)
    logits = [logits_all[m * C:(m + 1) * C, :] for m in range(M)]       # (C, nb)
    mx = logits[0]
    for m in range(1, M):
        mx = jnp.maximum(mx, logits[m])
    exps = [jnp.exp(l - mx) for l in logits]
    den = exps[0]
    for m in range(1, M):
        den = den + exps[m]
    inv = pl.reciprocal(den, approx=True)        # EUP slot, off the VALU
    attn = [e * inv for e in exps]               # each (C, nb)

    # --- feats_V = sum_m feats_m * attention_m, lane-dense (C, HW) per batch -----
    for b in range(nb):
        v = feats[0][:, b * HW:(b + 1) * HW] * attn[0][:, b:b + 1]
        for m in range(1, M):
            v = v + feats[m][:, b * HW:(b + 1) * HW] * attn[m][:, b:b + 1]
        out_ref[b, :, :] = v.astype(out_ref.dtype)


def fcb_dummy_broadcast(bfcs_ref):
    # tiny helper so the bias load reads cleanly in the kernel body
    return bfcs_ref[...]


def _batches_per_step():
    """Chip-aware batch blocking: 1 batch/step on v7x (2 TensorCores, 'parallel'
    grid axis shards across cores); fold the whole batch into one step on
    single-TC chips (v5e/v6e) where extra grid steps only add overhead."""
    try:
        kind = jax.devices()[0].device_kind.lower()
    except Exception:
        return B
    if "v7" in kind or "7x" in kind:
        return 1
    return B


def skconv_pallas(x_nchw, p, nb=None):
    if nb is None:
        nb = _batches_per_step()
    assert B % nb == 0

    # zero-pad: H by DMAX on each side; W by 1 on the left (PyTorch pad_w=1) and by
    # (WP - W - 1) on the right so the padded width is WP (multiple of 8).
    xp = jnp.pad(x_nchw, ((0, 0), (0, 0), (DMAX, DMAX), (1, WP - W - 1)))
    xf = xp.reshape(B, C, SP).astype(jnp.bfloat16)        # bf16 MXU operands

    # block-diagonal masked-average matrix for GAP-as-matmul: column b averages the
    # W_OUT PyTorch-valid columns of batch b's (C, HW) slab.
    lane = np.arange(nb * HW)
    avg = ((lane % WP) < W_OUT).astype(np.float32) / float(H * W_OUT)
    gapw_np = np.zeros((nb * HW, nb), np.float32)
    for b in range(nb):
        gapw_np[b * HW:(b + 1) * HW, b] = avg[b * HW:(b + 1) * HW]
    gapw = jnp.asarray(gapw_np)

    def fixed(arr):
        n = arr.ndim
        return pl.BlockSpec(arr.shape, lambda i, n=n: (0,) * n)

    out = pl.pallas_call(
        _skconv_kernel,
        out_shape=jax.ShapeDtypeStruct((B, C, HW), jnp.float32),
        grid=(B // nb,),
        in_specs=[pl.BlockSpec((nb, C, SP), lambda i: (i, 0, 0)),
                  fixed(p['wbig']), fixed(p['bn_scale']), fixed(p['bn_bias']),
                  fixed(gapw), fixed(p['wfc']), fixed(p['fc_scale']),
                  fixed(p['fc_bias']), fixed(p['wfcs_flat']), fixed(p['bfcs_flat'])],
        out_specs=pl.BlockSpec((nb, C, HW), lambda i: (i, 0, 0)),
        compiler_params=pltpu.CompilerParams(dimension_semantics=("parallel",)),
    )(xf, p['wbig'], p['bn_scale'], p['bn_bias'], gapw, p['wfc'],
      p['fc_scale'], p['fc_bias'], p['wfcs_flat'], p['bfcs_flat'])

    # (B, C, H*WP) -> (B, C, H, WP) -> crop to the PyTorch-valid width W+2
    return out.reshape(B, C, H, WP)[:, :, :, :W_OUT]


def init_params(seed=0):
    # Deterministic synthetic parameters (shapes follow the PyTorch __init__).
    # TODO(synk): nn.Conv2d(kernel_size=(1,0), stride=(1,0)) in fc/fcs is degenerate in
    # PyTorch; implemented as the intended 1x1 conv (input is (B,C,1,1) after GAP).
    # TODO(synk): BatchNorm is applied in eval mode (folded scale/bias,
    # running_mean=0 / running_var=1); train-mode batch statistics are not reproduced.
    key = jax.random.PRNGKey(seed)
    ks = jax.random.split(key, 8)
    cpg = C // G
    eps = 1e-5

    # branch grouped-conv weights, PyTorch layout (M, C_out, C_in/G, kH=3) (kW=1 squeezed)
    wg = np.asarray(0.15 * jax.random.normal(ks[0], (M, C, cpg, 3), jnp.float32))
    gamma = np.asarray(1.0 + 0.1 * jax.random.normal(ks[1], (M, C), jnp.float32))
    beta = np.asarray(0.1 * jax.random.normal(ks[2], (M, C), jnp.float32))
    wfc_t = np.asarray(0.15 * jax.random.normal(ks[3], (D, C), jnp.float32))   # (out,in)
    gfc = np.asarray(1.0 + 0.1 * jax.random.normal(ks[4], (D,), jnp.float32))
    bfc_bn = np.asarray(0.1 * jax.random.normal(ks[5], (D,), jnp.float32))
    wfcs_t = np.asarray(0.15 * jax.random.normal(ks[6], (M, C, D), jnp.float32))
    bfcs_raw = np.asarray(0.1 * jax.random.normal(ks[7], (M, C), jnp.float32))

    # per-branch fused 3-tap conv weight: (M, C_out, 3*C_in); only same-group blocks
    # are nonzero (block-diagonal group embedding — fine at C=16).
    wbig = np.zeros((M, C, 3 * C), np.float32)
    for m in range(M):
        for kh in range(3):
            for g in range(G):
                lo = g * cpg
                wbig[m, lo:lo + cpg, kh * C + lo:kh * C + lo + cpg] = \
                    wg[m, lo:lo + cpg, :, kh]

    bn_scale = (gamma / np.sqrt(1.0 + eps)).reshape(M, C, 1)
    bn_bias = beta.reshape(M, C, 1)
    fc_scale = (gfc / np.sqrt(1.0 + eps)).reshape(D, 1)
    fc_bias = bfc_bn.reshape(D, 1)

    # fused fcs weight: rows = (branch, channel)
    wfcs_flat = wfcs_t.reshape(M * C, D)
    bfcs_flat = bfcs_raw.reshape(M * C, 1)

    params = dict(
        wbig=jnp.asarray(wbig, jnp.bfloat16),
        bn_scale=jnp.asarray(bn_scale), bn_bias=jnp.asarray(bn_bias),
        wfc=jnp.asarray(wfc_t), fc_scale=jnp.asarray(fc_scale),
        fc_bias=jnp.asarray(fc_bias),
        wfcs_flat=jnp.asarray(wfcs_flat), bfcs_flat=jnp.asarray(bfcs_flat),
    )
    raw = dict(wg=jnp.asarray(wg), gamma=jnp.asarray(gamma), beta=jnp.asarray(beta),
               wfc_t=jnp.asarray(wfc_t), gfc=jnp.asarray(gfc),
               bfc_bn=jnp.asarray(bfc_bn), wfcs_t=jnp.asarray(wfcs_t),
               bfcs_raw=jnp.asarray(bfcs_raw))
    return params, raw


def ref_forward(x, raw):
    # Pure-JAX f32 mirror of the PyTorch forward (eval-mode BN).
    hp = jax.lax.Precision.HIGHEST
    eps = 1e-5
    cpg = C // G
    wg, gamma, beta = raw['wg'], raw['gamma'], raw['beta']
    xp = jnp.pad(x, ((0, 0), (0, 0), (DMAX, DMAX), (1, 1)))      # PyTorch pad_w = 1
    feats = []
    for m in range(M):
        dil = 1 + m
        acc = jnp.zeros((B, C, H, W_OUT), jnp.float32)
        for kh in range(3):
            off = DMAX + (kh - 1) * dil
            xs = xp[:, :, off:off + H, :]                        # (B, C, H, W_OUT)
            for g in range(G):
                lo = g * cpg
                acc = acc.at[:, lo:lo + cpg].add(
                    jnp.einsum('bihw,oi->bohw', xs[:, lo:lo + cpg],
                               wg[m, lo:lo + cpg, :, kh], precision=hp))
        scale = (gamma[m] / jnp.sqrt(1.0 + eps))[None, :, None, None]
        bias = beta[m][None, :, None, None]
        feats.append(jnp.maximum(acc * scale + bias, 0.0))
    U = sum(feats)
    S = jnp.mean(U, axis=(2, 3))                                  # (B, C)
    Z = jnp.einsum('bc,dc->bd', S, raw['wfc_t'], precision=hp)
    Z = Z * (raw['gfc'] / jnp.sqrt(1.0 + eps))[None, :] + raw['bfc_bn'][None, :]
    Z = jnp.maximum(Z, 0.0)                                       # (B, D)
    logits = jnp.stack(
        [jnp.einsum('bd,cd->bc', Z, raw['wfcs_t'][m], precision=hp)
         + raw['bfcs_raw'][m][None, :] for m in range(M)], axis=1)  # (B, M, C)
    attn = jax.nn.softmax(logits, axis=1)
    return sum(feats[m] * attn[:, m][:, :, None, None] for m in range(M))


if __name__ == "__main__":
    params, raw = init_params(0)
    x = jax.random.normal(jax.random.PRNGKey(0), (B, C, H, W), jnp.float32)

    out = jax.block_until_ready(skconv_pallas(x, params))
    ref = jax.block_until_ready(ref_forward(x, raw))

    assert out.shape == (B, C, H, W_OUT)
    # bf16 MXU operands for the fused branch conv -> slightly looser tolerance vs f32 ref
    if not bool(jnp.allclose(out, ref, atol=2e-2, rtol=2e-2)):
        raise AssertionError("Pallas SKConv output mismatch vs reference")

    print("KERNEL_OK")
</pallas_src>

<mosaic_0001>
module attributes {stable_mosaic.version = 11 : i64} {
  func.func @_skconv_kernel(%arg0: i32, %arg1: memref<2x16x320xbf16, #tpu.memory_space<vmem>>, %arg2: memref<2x16x48xbf16, #tpu.memory_space<vmem>>, %arg3: memref<2x16x1xf32, #tpu.memory_space<vmem>>, %arg4: memref<2x16x1xf32, #tpu.memory_space<vmem>>, %arg5: memref<512x2xf32, #tpu.memory_space<vmem>>, %arg6: memref<8x16xf32, #tpu.memory_space<vmem>>, %arg7: memref<8x1xf32, #tpu.memory_space<vmem>>, %arg8: memref<8x1xf32, #tpu.memory_space<vmem>>, %arg9: memref<32x8xf32, #tpu.memory_space<vmem>>, %arg10: memref<32x1xf32, #tpu.memory_space<vmem>>, %arg11: memref<2x16x256xf32, #tpu.memory_space<vmem>>) attributes {dimension_semantics = [#tpu.dimension_semantics<parallel>], iteration_bounds = array<i64: 1>, scalar_prefetch = 0 : i64, scratch_operands = 0 : i64, tpu.core_type = #tpu.core_type<tc>, window_params = [{transform_indices = @transform_0, window_bounds = array<i64: 2, 16, 320>}, {pipeline_mode = #tpu.pipeline_mode<synchronous>, transform_indices = @transform_1, window_bounds = array<i64: 2, 16, 48>}, {pipeline_mode = #tpu.pipeline_mode<synchronous>, transform_indices = @transform_2, window_bounds = array<i64: 2, 16, 1>}, {pipeline_mode = #tpu.pipeline_mode<synchronous>, transform_indices = @transform_3, window_bounds = array<i64: 2, 16, 1>}, {pipeline_mode = #tpu.pipeline_mode<synchronous>, transform_indices = @transform_4, window_bounds = array<i64: 512, 2>}, {pipeline_mode = #tpu.pipeline_mode<synchronous>, transform_indices = @transform_5, window_bounds = array<i64: 8, 16>}, {pipeline_mode = #tpu.pipeline_mode<synchronous>, transform_indices = @transform_6, window_bounds = array<i64: 8, 1>}, {pipeline_mode = #tpu.pipeline_mode<synchronous>, transform_indices = @transform_7, window_bounds = array<i64: 8, 1>}, {pipeline_mode = #tpu.pipeline_mode<synchronous>, transform_indices = @transform_8, window_bounds = array<i64: 32, 8>}, {pipeline_mode = #tpu.pipeline_mode<synchronous>, transform_indices = @transform_9, window_bounds = array<i64: 32, 1>}, {transform_indices = @transform_10, window_bounds = array<i64: 2, 16, 256>}]} {
    %c0 = arith.constant 0 : index
    %c0_0 = arith.constant 0 : index
    %c0_1 = arith.constant 0 : index
    %0 = vector.load %arg1[%c0, %c0_0, %c0_1] : memref<2x16x320xbf16, #tpu.memory_space<vmem>>, vector<1x16x320xbf16>
    %1 = vector.shape_cast %0 : vector<1x16x320xbf16> to vector<16x320xbf16>
    %c1 = arith.constant 1 : index
    %c0_2 = arith.constant 0 : index
    %c0_3 = arith.constant 0 : index
    %2 = vector.load %arg1[%c1, %c0_2, %c0_3] : memref<2x16x320xbf16, #tpu.memory_space<vmem>>, vector<1x16x320xbf16>
    %3 = vector.shape_cast %2 : vector<1x16x320xbf16> to vector<16x320xbf16>
    %4 = vector.extract_strided_slice %1 {offsets = [0, 0], sizes = [16, 256], strides = [1, 1]} : vector<16x320xbf16> to vector<16x256xbf16>
    %5 = vector.extract_strided_slice %3 {offsets = [0, 0], sizes = [16, 256], strides = [1, 1]} : vector<16x320xbf16> to vector<16x256xbf16>
    %6 = tpu.concatenate %4, %5 in 1 : vector<16x256xbf16>, vector<16x256xbf16> -> vector<16x512xbf16>
    %7 = vector.extract_strided_slice %1 {offsets = [0, 16], sizes = [16, 256], strides = [1, 1]} : vector<16x320xbf16> to vector<16x256xbf16>
    %8 = vector.extract_strided_slice %3 {offsets = [0, 16], sizes = [16, 256], strides = [1, 1]} : vector<16x320xbf16> to vector<16x256xbf16>
    %9 = tpu.concatenate %7, %8 in 1 : vector<16x256xbf16>, vector<16x256xbf16> -> vector<16x512xbf16>
    %10 = vector.extract_strided_slice %1 {offsets = [0, 32], sizes = [16, 256], strides = [1, 1]} : vector<16x320xbf16> to vector<16x256xbf16>
    %11 = vector.extract_strided_slice %3 {offsets = [0, 32], sizes = [16, 256], strides = [1, 1]} : vector<16x320xbf16> to vector<16x256xbf16>
    %12 = tpu.concatenate %10, %11 in 1 : vector<16x256xbf16>, vector<16x256xbf16> -> vector<16x512xbf16>
    %13 = vector.extract_strided_slice %1 {offsets = [0, 48], sizes = [16, 256], strides = [1, 1]} : vector<16x320xbf16> to vector<16x256xbf16>
    %14 = vector.extract_strided_slice %3 {offsets = [0, 48], sizes = [16, 256], strides = [1, 1]} : vector<16x320xbf16> to vector<16x256xbf16>
    %15 = tpu.concatenate %13, %14 in 1 : vector<16x256xbf16>, vector<16x256xbf16> -> vector<16x512xbf16>
    %16 = vector.extract_strided_slice %1 {offsets = [0, 64], sizes = [16, 256], strides = [1, 1]} : vector<16x320xbf16> to vector<16x256xbf16>
    %17 = vector.extract_strided_slice %3 {offsets = [0, 64], sizes = [16, 256], strides = [1, 1]} : vector<16x320xbf16> to vector<16x256xbf16>
    %18 = tpu.concatenate %16, %17 in 1 : vector<16x256xbf16>, vector<16x256xbf16> -> vector<16x512xbf16>
    %19 = tpu.concatenate %9, %12, %15 in 0 : vector<16x512xbf16>, vector<16x512xbf16>, vector<16x512xbf16> -> vector<48x512xbf16>
    %c0_4 = arith.constant 0 : index
    %c0_5 = arith.constant 0 : index
    %c0_6 = arith.constant 0 : index
    %20 = vector.load %arg2[%c0_4, %c0_5, %c0_6] : memref<2x16x48xbf16, #tpu.memory_space<vmem>>, vector<1x16x48xbf16>
    %21 = vector.shape_cast %20 : vector<1x16x48xbf16> to vector<16x48xbf16>
    %cst = arith.constant dense<0.000000e+00> : vector<16x512xf32>
    %22 = tpu.matmul %21, %19, %cst {dimension_numbers = #tpu.dot_dimension_numbers<[1], [0], [0], [1], [0, 0, 1, 1], [], []>} : vector<16x48xbf16>, vector<48x512xbf16>, vector<16x512xf32> -> vector<16x512xf32>
    %c0_7 = arith.constant 0 : index
    %c0_8 = arith.constant 0 : index
    %c0_9 = arith.constant 0 : index
    %23 = vector.load %arg3[%c0_7, %c0_8, %c0_9] : memref<2x16x1xf32, #tpu.memory_space<vmem>>, vector<1x16x1xf32>
    %24 = vector.shape_cast %23 : vector<1x16x1xf32> to vector<16x1xf32>
    %25 = vector.broadcast %24 : vector<16x1xf32> to vector<16x512xf32>
    %26 = arith.mulf %22, %25 : vector<16x512xf32>
    %c0_10 = arith.constant 0 : index
    %c0_11 = arith.constant 0 : index
    %c0_12 = arith.constant 0 : index
    %27 = vector.load %arg4[%c0_10, %c0_11, %c0_12] : memref<2x16x1xf32, #tpu.memory_space<vmem>>, vector<1x16x1xf32>
    %28 = vector.shape_cast %27 : vector<1x16x1xf32> to vector<16x1xf32>
    %29 = vector.broadcast %28 : vector<16x1xf32> to vector<16x512xf32>
    %30 = arith.addf %26, %29 : vector<16x512xf32>
    %cst_13 = arith.constant 0.000000e+00 : f32
    %31 = vector.broadcast %cst_13 : f32 to vector<16x512xf32>
    %32 = arith.maximumf %30, %31 : vector<16x512xf32>
    %33 = tpu.concatenate %6, %12, %18 in 0 : vector<16x512xbf16>, vector<16x512xbf16>, vector<16x512xbf16> -> vector<48x512xbf16>
    %c1_14 = arith.constant 1 : index
    %c0_15 = arith.constant 0 : index
    %c0_16 = arith.constant 0 : index
    %34 = vector.load %arg2[%c1_14, %c0_15, %c0_16] : memref<2x16x48xbf16, #tpu.memory_space<vmem>>, vector<1x16x48xbf16>
    %35 = vector.shape_cast %34 : vector<1x16x48xbf16> to vector<16x48xbf16>
    %cst_17 = arith.constant dense<0.000000e+00> : vector<16x512xf32>
    %36 = tpu.matmul %35, %33, %cst_17 {dimension_numbers = #tpu.dot_dimension_numbers<[1], [0], [0], [1], [0, 0, 1, 1], [], []>} : vector<16x48xbf16>, vector<48x512xbf16>, vector<16x512xf32> -> vector<16x512xf32>
    %c1_18 = arith.constant 1 : index
    %c0_19 = arith.constant 0 : index
    %c0_20 = arith.constant 0 : index
    %37 = vector.load %arg3[%c1_18, %c0_19, %c0_20] : memref<2x16x1xf32, #tpu.memory_space<vmem>>, vector<1x16x1xf32>
    %38 = vector.shape_cast %37 : vector<1x16x1xf32> to vector<16x1xf32>
    %39 = vector.broadcast %38 : vector<16x1xf32> to vector<16x512xf32>
    %40 = arith.mulf %36, %39 : vector<16x512xf32>
    %c1_21 = arith.constant 1 : index
    %c0_22 = arith.constant 0 : index
    %c0_23 = arith.constant 0 : index
    %41 = vector.load %arg4[%c1_21, %c0_22, %c0_23] : memref<2x16x1xf32, #tpu.memory_space<vmem>>, vector<1x16x1xf32>
    %42 = vector.shape_cast %41 : vector<1x16x1xf32> to vector<16x1xf32>
    %43 = vector.broadcast %42 : vector<16x1xf32> to vector<16x512xf32>
    %44 = arith.addf %40, %43 : vector<16x512xf32>
    %cst_24 = arith.constant 0.000000e+00 : f32
    %45 = vector.broadcast %cst_24 : f32 to vector<16x512xf32>
    %46 = arith.maximumf %44, %45 : vector<16x512xf32>
    %47 = arith.addf %32, %46 : vector<16x512xf32>
    %c0_25 = arith.constant 0 : index
    %c0_26 = arith.constant 0 : index
    %48 = vector.load %arg5[%c0_25, %c0_26] : memref<512x2xf32, #tpu.memory_space<vmem>>, vector<512x2xf32>
    %cst_27 = arith.constant dense<0.000000e+00> : vector<16x2xf32>
    %49 = tpu.matmul %47, %48, %cst_27 {dimension_numbers = #tpu.dot_dimension_numbers<[1], [0], [0], [1], [0, 0, 1, 1], [], []>} : vector<16x512xf32>, vector<512x2xf32>, vector<16x2xf32> -> vector<16x2xf32>
    %c0_28 = arith.constant 0 : index
    %c0_29 = arith.constant 0 : index
    %50 = vector.load %arg6[%c0_28, %c0_29] : memref<8x16xf32, #tpu.memory_space<vmem>>, vector<8x16xf32>
    %cst_30 = arith.constant dense<0.000000e+00> : vector<8x2xf32>
    %51 = tpu.matmul %50, %49, %cst_30 {dimension_numbers = #tpu.dot_dimension_numbers<[1], [0], [0], [1], [0, 0, 1, 1], [], []>} : vector<8x16xf32>, vector<16x2xf32>, vector<8x2xf32> -> vector<8x2xf32>
    %c0_31 = arith.constant 0 : index
    %c0_32 = arith.constant 0 : index
    %52 = vector.load %arg7[%c0_31, %c0_32] : memref<8x1xf32, #tpu.memory_space<vmem>>, vector<8x1xf32>
    %53 = vector.broadcast %52 : vector<8x1xf32> to vector<8x2xf32>
    %54 = arith.mulf %51, %53 : vector<8x2xf32>
    %c0_33 = arith.constant 0 : index
    %c0_34 = arith.constant 0 : index
    %55 = vector.load %arg8[%c0_33, %c0_34] : memref<8x1xf32, #tpu.memory_space<vmem>>, vector<8x1xf32>
    %56 = vector.broadcast %55 : vector<8x1xf32> to vector<8x2xf32>
    %57 = arith.addf %54, %56 : vector<8x2xf32>
    %cst_35 = arith.constant 0.000000e+00 : f32
    %58 = vector.broadcast %cst_35 : f32 to vector<8x2xf32>
    %59 = arith.maximumf %57, %58 : vector<8x2xf32>
    %c0_36 = arith.constant 0 : index
    %c0_37 = arith.constant 0 : index
    %60 = vector.load %arg9[%c0_36, %c0_37] : memref<32x8xf32, #tpu.memory_space<vmem>>, vector<32x8xf32>
    %cst_38 = arith.constant dense<0.000000e+00> : vector<32x2xf32>
    %61 = tpu.matmul %60, %59, %cst_38 {dimension_numbers = #tpu.dot_dimension_numbers<[1], [0], [0], [1], [0, 0, 1, 1], [], []>} : vector<32x8xf32>, vector<8x2xf32>, vector<32x2xf32> -> vector<32x2xf32>
    %c0_39 = arith.constant 0 : index
    %c0_40 = arith.constant 0 : index
    %62 = vector.load %arg10[%c0_39, %c0_40] : memref<32x1xf32, #tpu.memory_space<vmem>>, vector<32x1xf32>
    %63 = vector.broadcast %62 : vector<32x1xf32> to vector<32x2xf32>
    %64 = arith.addf %61, %63 : vector<32x2xf32>
    %65 = vector.extract_strided_slice %64 {offsets = [0, 0], sizes = [16, 2], strides = [1, 1]} : vector<32x2xf32> to vector<16x2xf32>
    %66 = vector.extract_strided_slice %64 {offsets = [16, 0], sizes = [16, 2], strides = [1, 1]} : vector<32x2xf32> to vector<16x2xf32>
    %67 = arith.maximumf %65, %66 : vector<16x2xf32>
    %68 = arith.subf %65, %67 : vector<16x2xf32>
    %69 = math.exp %68 : vector<16x2xf32>
    %70 = arith.subf %66, %67 : vector<16x2xf32>
    %71 = math.exp %70 : vector<16x2xf32>
    %72 = arith.addf %69, %71 : vector<16x2xf32>
    %73 = tpu.reciprocal %72 {approx = true} : vector<16x2xf32> -> vector<16x2xf32>
    %74 = arith.mulf %69, %73 : vector<16x2xf32>
    %75 = arith.mulf %71, %73 : vector<16x2xf32>
    %76 = vector.extract_strided_slice %32 {offsets = [0, 0], sizes = [16, 256], strides = [1, 1]} : vector<16x512xf32> to vector<16x256xf32>
    %77 = vector.extract_strided_slice %74 {offsets = [0, 0], sizes = [16, 1], strides = [1, 1]} : vector<16x2xf32> to vector<16x1xf32>
    %78 = vector.broadcast %77 : vector<16x1xf32> to vector<16x256xf32>
    %79 = arith.mulf %76, %78 : vector<16x256xf32>
    %80 = vector.extract_strided_slice %46 {offsets = [0, 0], sizes = [16, 256], strides = [1, 1]} : vector<16x512xf32> to vector<16x256xf32>
    %81 = vector.extract_strided_slice %75 {offsets = [0, 0], sizes = [16, 1], strides = [1, 1]} : vector<16x2xf32> to vector<16x1xf32>
    %82 = vector.broadcast %81 : vector<16x1xf32> to vector<16x256xf32>
    %83 = arith.mulf %80, %82 : vector<16x256xf32>
    %84 = arith.addf %79, %83 : vector<16x256xf32>
    %c0_41 = arith.constant 0 : index
    %c0_42 = arith.constant 0 : index
    %c0_43 = arith.constant 0 : index
    %85 = vector.load %arg11[%c0_41, %c0_42, %c0_43] : memref<2x16x256xf32, #tpu.memory_space<vmem>>, vector<1x16x256xf32>
    %86 = vector.shape_cast %85 : vector<1x16x256xf32> to vector<16x256xf32>
    %87 = vector.shape_cast %84 : vector<16x256xf32> to vector<1x16x256xf32>
    tpu.vector_store %arg11[%c0_41, %c0_42, %c0_43], %87 {strides = array<i32>} : memref<2x16x256xf32, #tpu.memory_space<vmem>>, vector<1x16x256xf32>,
    %88 = vector.extract_strided_slice %32 {offsets = [0, 256], sizes = [16, 256], strides = [1, 1]} : vector<16x512xf32> to vector<16x256xf32>
    %89 = vector.extract_strided_slice %74 {offsets = [0, 1], sizes = [16, 1], strides = [1, 1]} : vector<16x2xf32> to vector<16x1xf32>
    %90 = vector.broadcast %89 : vector<16x1xf32> to vector<16x256xf32>
    %91 = arith.mulf %88, %90 : vector<16x256xf32>
    %92 = vector.extract_strided_slice %46 {offsets = [0, 256], sizes = [16, 256], strides = [1, 1]} : vector<16x512xf32> to vector<16x256xf32>
    %93 = vector.extract_strided_slice %75 {offsets = [0, 1], sizes = [16, 1], strides = [1, 1]} : vector<16x2xf32> to vector<16x1xf32>
    %94 = vector.broadcast %93 : vector<16x1xf32> to vector<16x256xf32>
    %95 = arith.mulf %92, %94 : vector<16x256xf32>
    %96 = arith.addf %91, %95 : vector<16x256xf32>
    %c1_44 = arith.constant 1 : index
    %c0_45 = arith.constant 0 : index
    %c0_46 = arith.constant 0 : index
    %97 = vector.load %arg11[%c1_44, %c0_45, %c0_46] : memref<2x16x256xf32, #tpu.memory_space<vmem>>, vector<1x16x256xf32>
    %98 = vector.shape_cast %97 : vector<1x16x256xf32> to vector<16x256xf32>
    %99 = vector.shape_cast %96 : vector<16x256xf32> to vector<1x16x256xf32>
    tpu.vector_store %arg11[%c1_44, %c0_45, %c0_46], %99 {strides = array<i32>} : memref<2x16x256xf32, #tpu.memory_space<vmem>>, vector<1x16x256xf32>,
    return
  }
  func.func @transform_0(%arg0: i32) -> (i32, i32, i32) {
    %c0_i32 = arith.constant 0 : i32
    %c0_i32_0 = arith.constant 0 : i32
    %c0_i32_1 = arith.constant 0 : i32
    return %arg0, %c0_i32, %c0_i32_0 : i32, i32, i32
  }
  func.func @transform_1(%arg0: i32) -> (i32, i32, i32) {
    %c0_i32 = arith.constant 0 : i32
    %c0_i32_0 = arith.constant 0 : i32
    %c0_i32_1 = arith.constant 0 : i32
    %c0_i32_2 = arith.constant 0 : i32
    return %c0_i32, %c0_i32_0, %c0_i32_1 : i32, i32, i32
  }
  func.func @transform_2(%arg0: i32) -> (i32, i32, i32) {
    %c0_i32 = arith.constant 0 : i32
    %c0_i32_0 = arith.constant 0 : i32
    %c0_i32_1 = arith.constant 0 : i32
    %c0_i32_2 = arith.constant 0 : i32
    return %c0_i32, %c0_i32_0, %c0_i32_1 : i32, i32, i32
  }
  func.func @transform_3(%arg0: i32) -> (i32, i32, i32) {
    %c0_i32 = arith.constant 0 : i32
    %c0_i32_0 = arith.constant 0 : i32
    %c0_i32_1 = arith.constant 0 : i32
    %c0_i32_2 = arith.constant 0 : i32
    return %c0_i32, %c0_i32_0, %c0_i32_1 : i32, i32, i32
  }
  func.func @transform_4(%arg0: i32) -> (i32, i32) {
    %c0_i32 = arith.constant 0 : i32
    %c0_i32_0 = arith.constant 0 : i32
    %c0_i32_1 = arith.constant 0 : i32
    return %c0_i32, %c0_i32_0 : i32, i32
  }
  func.func @transform_5(%arg0: i32) -> (i32, i32) {
    %c0_i32 = arith.constant 0 : i32
    %c0_i32_0 = arith.constant 0 : i32
    %c0_i32_1 = arith.constant 0 : i32
    return %c0_i32, %c0_i32_0 : i32, i32
  }
  func.func @transform_6(%arg0: i32) -> (i32, i32) {
    %c0_i32 = arith.constant 0 : i32
    %c0_i32_0 = arith.constant 0 : i32
    %c0_i32_1 = arith.constant 0 : i32
    return %c0_i32, %c0_i32_0 : i32, i32
  }
  func.func @transform_7(%arg0: i32) -> (i32, i32) {
    %c0_i32 = arith.constant 0 : i32
    %c0_i32_0 = arith.constant 0 : i32
    %c0_i32_1 = arith.constant 0 : i32
    return %c0_i32, %c0_i32_0 : i32, i32
  }
  func.func @transform_8(%arg0: i32) -> (i32, i32) {
    %c0_i32 = arith.constant 0 : i32
    %c0_i32_0 = arith.constant 0 : i32
    %c0_i32_1 = arith.constant 0 : i32
    return %c0_i32, %c0_i32_0 : i32, i32
  }
  func.func @transform_9(%arg0: i32) -> (i32, i32) {
    %c0_i32 = arith.constant 0 : i32
    %c0_i32_0 = arith.constant 0 : i32
    %c0_i32_1 = arith.constant 0 : i32
    return %c0_i32, %c0_i32_0 : i32, i32
  }
  func.func @transform_10(%arg0: i32) -> (i32, i32, i32) {
    %c0_i32 = arith.constant 0 : i32
    %c0_i32_0 = arith.constant 0 : i32
    %c0_i32_1 = arith.constant 0 : i32
    return %arg0, %c0_i32, %c0_i32_0 : i32, i32, i32
  }
}

</mosaic_0001>

<llo_original>
// kernel: tpu_custom_call.1
$region0: #{tpu_custom_call.1}
  #allocation0 [shape = 'u32[]', space=smem, size = 0x4, offset = 0x4, fixed_abs, tag = 'smem constant byte address 0x4 - core index']
  #allocation1 [shape = 'u32[144,128]{1,0:T(1,128)}', space=vmem, size = 0x12000, scoped, tag = 'internal scratch']
  %s0 = inlined_call_operand.vmem [shape: bf16[2,16,320], index: 0, kind: input, shape index: {}]
  %s1 = inlined_call_operand.vmem [shape: bf16[2,16,48], index: 1, kind: input, shape index: {}]
  %s2 = inlined_call_operand.vmem [shape: f32[2,16,1], index: 2, kind: input, shape index: {}]
  %s3 = inlined_call_operand.vmem [shape: f32[2,16,1], index: 3, kind: input, shape index: {}]
  %s4 = inlined_call_operand.vmem [shape: f32[512,2], index: 4, kind: input, shape index: {}]
  %s5 = inlined_call_operand.vmem [shape: f32[8,16], index: 5, kind: input, shape index: {}]
  %s6 = inlined_call_operand.vmem [shape: f32[8,1], index: 6, kind: input, shape index: {}]
  %s7 = inlined_call_operand.vmem [shape: f32[8,1], index: 7, kind: input, shape index: {}]
  %s8 = inlined_call_operand.vmem [shape: f32[32,8], index: 8, kind: input, shape index: {}]
  %s9 = inlined_call_operand.vmem [shape: f32[32,1], index: 9, kind: input, shape index: {}]
  %s10 = inlined_call_operand.hbm [shape: f32[2,16,256], index: 10, kind: output, shape index: {}]
  %s11 = sld [smem:[#allocation0]]
  $region50: #{tpu_custom_call.1} parent=0
    _
  %s13 = ssub.s32 1, %s11
  %s14 = scalar_select 0, %s13, %s11
  $region1: #{tpu_custom_call.1} parent=0
    #allocation2 [shape = 'u8[32768]{0}', space=vmem, size = 0x8000, scoped, tag = 'output window, operand 0, single buffered']
    #allocation3 [shape = 's32[1]{0}', space=sflag, size = 0x4, scoped, tag = 'scoped memory for tpu_custom_call.1']
    %15 = vsyncpa [#allocation3], 0
    // Predicated region
    $region2: #{tpu_custom_call.1} parent=1 // pred_check
      _
    $region3: #{tpu_custom_call.1} parent=1 // pred_check_branch
      %17 = sbr.rel (0) target = $region5
    $region4: #{tpu_custom_call.1} parent=1 // pred_region
      _
    $region5: #{tpu_custom_call.1} parent=1 // pred_fallthru
      _
    // Predicated region
    $region6: #{tpu_custom_call.1} parent=1 // pred_check
      _
    $region7: #{tpu_custom_call.1} parent=1 // pred_check_branch
      %19 = sbr.rel (0) target = $region9
    $region8: #{tpu_custom_call.1} parent=1 // pred_region
      _
    $region9: #{tpu_custom_call.1} parent=1 // pred_fallthru
      _
    // Predicated region
    $region10: #{tpu_custom_call.1} parent=1 // pred_check
      _
    $region11: #{tpu_custom_call.1} parent=1 // pred_check_branch
      %21 = sbr.rel (0) target = $region13
    $region12: #{tpu_custom_call.1} parent=1 // pred_region
      _
    $region13: #{tpu_custom_call.1} parent=1 // pred_fallthru
      _
    // Predicated region
    $region14: #{tpu_custom_call.1} parent=1 // pred_check
      _
    $region15: #{tpu_custom_call.1} parent=1 // pred_check_branch
      %23 = sbr.rel (0) target = $region17
    $region16: #{tpu_custom_call.1} parent=1 // pred_region
      _
    $region17: #{tpu_custom_call.1} parent=1 // pred_fallthru
      _
    // Predicated region
    $region18: #{tpu_custom_call.1} parent=1 // pred_check
      _
    $region19: #{tpu_custom_call.1} parent=1 // pred_check_branch
      %25 = sbr.rel (0) target = $region21
    $region20: #{tpu_custom_call.1} parent=1 // pred_region
      _
    $region21: #{tpu_custom_call.1} parent=1 // pred_fallthru
      _
    // Predicated region
    $region22: #{tpu_custom_call.1} parent=1 // pred_check
      _
    $region23: #{tpu_custom_call.1} parent=1 // pred_check_branch
      %27 = sbr.rel (0) target = $region25
    $region24: #{tpu_custom_call.1} parent=1 // pred_region
      _
    $region25: #{tpu_custom_call.1} parent=1 // pred_fallthru
      _
    // Predicated region
    $region26: #{tpu_custom_call.1} parent=1 // pred_check
      _
    $region27: #{tpu_custom_call.1} parent=1 // pred_check_branch
      %29 = sbr.rel (0) target = $region29
    $region28: #{tpu_custom_call.1} parent=1 // pred_region
      _
    $region29: #{tpu_custom_call.1} parent=1 // pred_fallthru
      _
    // Predicated region
    $region30: #{tpu_custom_call.1} parent=1 // pred_check
      _
    $region31: #{tpu_custom_call.1} parent=1 // pred_check_branch
      %31 = sbr.rel (0) target = $region33
    $region32: #{tpu_custom_call.1} parent=1 // pred_region
      _
    $region33: #{tpu_custom_call.1} parent=1 // pred_fallthru
      _
    // Predicated region
    $region34: #{tpu_custom_call.1} parent=1 // pred_check
      _
    $region35: #{tpu_custom_call.1} parent=1 // pred_check_branch
      %33 = sbr.rel (0) target = $region37
    $region36: #{tpu_custom_call.1} parent=1 // pred_region
      _
    $region37: #{tpu_custom_call.1} parent=1 // pred_fallthru
      _
    // Predicated region
    $region38: #{tpu_custom_call.1} parent=1 // pred_check
      _
    $region39: #{tpu_custom_call.1} parent=1 // pred_check_branch
      %35 = sbr.rel (0) target = $region41
    $region40: #{tpu_custom_call.1} parent=1 // pred_region
      _
    $region41: #{tpu_custom_call.1} parent=1 // pred_fallthru
      _
    %v37 = vld [vmem:[%s0] sm:$0xff]
    %v38 = vld [vmem:[%s0 + $0x8] sm:$0xf]
    %v39 = vld [vmem:[%s0 + $0xc] sm:$0xff]
    %v40 = vld [vmem:[%s0 + $0x14] sm:$0xf]
    %s41 = scalar_lea.vmem %s0, 24
    %v42 = vld [vmem:[%s41] sm:$0xff]
    %v43 = vld [vmem:[%s41 + $0x8] sm:$0xf]
    %v44 = vld [vmem:[%s41 + $0xc] sm:$0xff]
    %v45 = vld [vmem:[%s41 + $0x14] sm:$0xf]
    %v48 = vunpack.c.l.b16 %v37
    %v49 = vunpack.c.h.b16 %v37
    %v50 = vunpack.c.l.b16 %v39
    %v51 = vunpack.c.h.b16 %v39
    %v52 = vpack.c.b16 %v50, %v48
    %v53 = vpack.c.b16 %v51, %v49
    %v58 = vunpack.c.l.b16 %v42
    %v59 = vunpack.c.h.b16 %v42
    %v60 = vunpack.c.l.b16 %v44
    %v61 = vunpack.c.h.b16 %v44
    %v62 = vpack.c.b16 %v60, %v58
    %v63 = vpack.c.b16 %v61, %v59
    %v68 = vunpack.c.l.b16 %v38
    %v69 = vunpack.c.l.b16 %v40
    %v70 = vpack.c.b16 %v69, %v68
    %71 = vrot.lane.b32.xlu0 %v52, 112
    %v72 = vpop.permute.xlu0 %71
    %73 = vrot.lane.b32.xlu0 %v53, 112
    %v74 = vpop.permute.xlu0 %73
    %75 = vrot.lane.b32.xlu0 %v70, 112
    %v76 = vpop.permute.xlu0 %75
    %vm77 = vcmask 916480
    %v78 = vsel %vm77, %v72, %v74
    %v79 = vsel %vm77, %v74, %v76
    %v84 = vunpack.c.l.b16 %v43
    %v85 = vunpack.c.l.b16 %v45
    %v86 = vpack.c.b16 %v85, %v84
    %87 = vrot.lane.b32.xlu0 %v62, 112
    %v88 = vpop.permute.xlu0 %87
    %89 = vrot.lane.b32.xlu0 %v63, 112
    %v90 = vpop.permute.xlu0 %89
    %91 = vrot.lane.b32.xlu0 %v86, 112
    %v92 = vpop.permute.xlu0 %91
    %v93 = vsel %vm77, %v88, %v90
    %v94 = vsel %vm77, %v90, %v92
    %97 = vrot.lane.b32.xlu0 %v52, 96
    %v98 = vpop.permute.xlu0 %97
    %99 = vrot.lane.b32.xlu0 %v53, 96
    %v100 = vpop.permute.xlu0 %99
    %101 = vrot.lane.b32.xlu0 %v70, 96
    %v102 = vpop.permute.xlu0 %101
    %vm103 = vcmask 785408
    %v104 = vsel %vm103, %v98, %v100
    %v105 = vsel %vm103, %v100, %v102
    %108 = vrot.lane.b32.xlu0 %v62, 96
    %v109 = vpop.permute.xlu0 %108
    %110 = vrot.lane.b32.xlu0 %v63, 96
    %v111 = vpop.permute.xlu0 %110
    %112 = vrot.lane.b32.xlu0 %v86, 96
    %v113 = vpop.permute.xlu0 %112
    %v114 = vsel %vm103, %v109, %v111
    %v115 = vsel %vm103, %v111, %v113
    %118 = vrot.lane.b32.xlu0 %v52, 80
    %v119 = vpop.permute.xlu0 %118
    %120 = vrot.lane.b32.xlu0 %v53, 80
    %v121 = vpop.permute.xlu0 %120
    %122 = vrot.lane.b32.xlu0 %v70, 80
    %v123 = vpop.permute.xlu0 %122
    %vm124 = vcmask 654336
    %v125 = vsel %vm124, %v119, %v121
    %v126 = vsel %vm124, %v121, %v123
    %129 = vrot.lane.b32.xlu0 %v62, 80
    %v130 = vpop.permute.xlu0 %129
    %131 = vrot.lane.b32.xlu0 %v63, 80
    %v132 = vpop.permute.xlu0 %131
    %133 = vrot.lane.b32.xlu0 %v86, 80
    %v134 = vpop.permute.xlu0 %133
    %v135 = vsel %vm124, %v130, %v132
    %v136 = vsel %vm124, %v132, %v134
    %139 = vrot.lane.b32.xlu0 %v52, 64
    %v140 = vpop.permute.xlu0 %139
    %141 = vrot.lane.b32.xlu0 %v53, 64
    %v142 = vpop.permute.xlu0 %141
    %143 = vrot.lane.b32.xlu0 %v70, 64
    %v144 = vpop.permute.xlu0 %143
    %vm145 = vcmask 523264
    %v146 = vsel %vm145, %v140, %v142
    %v147 = vsel %vm145, %v142, %v144
    %150 = vrot.lane.b32.xlu0 %v62, 64
    %v151 = vpop.permute.xlu0 %150
    %152 = vrot.lane.b32.xlu0 %v63, 64
    %v153 = vpop.permute.xlu0 %152
    %154 = vrot.lane.b32.xlu0 %v86, 64
    %v155 = vpop.permute.xlu0 %154
    %v156 = vsel %vm145, %v151, %v153
    %v157 = vsel %vm145, %v153, %v155
    %v160 = vld [vmem:[%s1] sm:$0xf]
    %v161 = vld [vmem:[%s1 + $0x4] sm:$0xf]
    %v164 = vunpack.c.l.b16 %v160
    %v165 = vunpack.c.l.b16 %v161
    %v166 = vpack.c.b16 %v165, %v164
    %vm167 = vcmask 392192
    %v169 = vsel %vm167, %v166, 0
    %171 = vmatprep.subr.bf16.mxu0 %v79
    %172 = vmatpush1.bf16.msra.mxu0 %v78
    %173 = vmatprep.subr.bf16.mxu0 %v105
    %174 = vmatpush1.bf16.msra.mxu0 %v104
    %175 = vmatprep.subr.bf16.mxu0 %v126
    %176 = vmatpush1.bf16.msra.mxu0 %v125
    %177 = vmatprep.subr.bf16.mxu0 0
    %178 = vmatpush1.bf16.msra.mxu0 0
    %179 = vmatprep.subr.bf16.mxu0 0
    %180 = vmatpush1.bf16.msra.mxu0 0
    %181 = vmatprep.subr.bf16.mxu0 0
    %182 = vmatpush1.bf16.msra.mxu0 0
    %183 = vmatprep.subr.bf16.mxu0 0
    %184 = vmatpush1.bf16.msra.mxu0 0
    %185 = vmatprep.subr.bf16.mxu0 0
    %186 = vmatpush1.bf16.msra.mxu0 0
    %187 = vmatprep.subr.bf16.mxu0 0
    %188 = vmatpush1.bf16.msra.mxu0 0
    %189 = vmatprep.subr.bf16.mxu0 0
    %190 = vmatpush1.bf16.msra.mxu0 0
    %191 = vmatprep.subr.bf16.mxu0 0
    %192 = vmatpush1.bf16.msra.mxu0 0
    %193 = vmatprep.subr.bf16.mxu0 0
    %194 = vmatpush1.bf16.msra.mxu0 0
    %195 = vmatprep.subr.bf16.mxu0 0
    %196 = vmatpush1.bf16.msra.mxu0 0
    %197 = vmatprep.subr.bf16.mxu0 0
    %198 = vmatpush1.bf16.msra.mxu0 0
    %199 = vmatprep.subr.bf16.mxu0 0
    %200 = vmatpush1.bf16.msra.mxu0 0
    %201 = vmatprep.subr.bf16.mxu0 0
    %202 = vmatpush1.bf16.msra.mxu0 0
    %203 = vmatprep.mubr.bf16.mxu0 0
    %204 = vmatmul.mubr.bf16.gmra.mrb[0].mxu0 %v169
    %v205 = vpop.f32.mrb[0].mxu0
    %v206 = vadd.f32 0.0, %v205
    %v207 = vpop.f32.mrb[0].mxu0
    %v208 = vadd.f32 0.0, %v207
    %v209 = vpop.f32.mrb[0].mxu0
    %v210 = vadd.f32 0.0, %v209
    %v211 = vpop.f32.mrb[0].mxu0
    %v212 = vadd.f32 0.0, %v211
    %213 = vdwg.mxu0
    %214 = vmatprep.subr.bf16.mxu0 %v94
    %215 = vmatpush1.bf16.msra.mxu0 %v93
    %216 = vmatprep.subr.bf16.mxu0 %v115
    %217 = vmatpush1.bf16.msra.mxu0 %v114
    %218 = vmatprep.subr.bf16.mxu0 %v136
    %219 = vmatpush1.bf16.msra.mxu0 %v135
    %220 = vmatprep.subr.bf16.mxu0 0
    %221 = vmatpush1.bf16.msra.mxu0 0
    %222 = vmatprep.subr.bf16.mxu0 0
    %223 = vmatpush1.bf16.msra.mxu0 0
    %224 = vmatprep.subr.bf16.mxu0 0
    %225 = vmatpush1.bf16.msra.mxu0 0
    %226 = vmatprep.subr.bf16.mxu0 0
    %227 = vmatpush1.bf16.msra.mxu0 0
    %228 = vmatprep.subr.bf16.mxu0 0
    %229 = vmatpush1.bf16.msra.mxu0 0
    %230 = vmatprep.subr.bf16.mxu0 0
    %231 = vmatpush1.bf16.msra.mxu0 0
    %232 = vmatprep.subr.bf16.mxu0 0
    %233 = vmatpush1.bf16.msra.mxu0 0
    %234 = vmatprep.subr.bf16.mxu0 0
    %235 = vmatpush1.bf16.msra.mxu0 0
    %236 = vmatprep.subr.bf16.mxu0 0
    %237 = vmatpush1.bf16.msra.mxu0 0
    %238 = vmatprep.subr.bf16.mxu0 0
    %239 = vmatpush1.bf16.msra.mxu0 0
    %240 = vmatprep.subr.bf16.mxu0 0
    %241 = vmatpush1.bf16.msra.mxu0 0
    %242 = vmatprep.subr.bf16.mxu0 0
    %243 = vmatpush1.bf16.msra.mxu0 0
    %244 = vmatprep.subr.bf16.mxu0 0
    %245 = vmatpush1.bf16.msra.mxu0 0
    %246 = vmatprep.mubr.bf16.mxu0 0
    %247 = vmatmul.mubr.bf16.gmra.mrb[0].mxu0 %v169
    %v248 = vpop.f32.mrb[0].mxu0
    %v249 = vadd.f32 0.0, %v248
    %v250 = vpop.f32.mrb[0].mxu0
    %v251 = vadd.f32 0.0, %v250
    %v252 = vpop.f32.mrb[0].mxu0
    %v253 = vadd.f32 0.0, %v252
    %v254 = vpop.f32.mrb[0].mxu0
    %v255 = vadd.f32 0.0, %v254
    %256 = vdwg.mxu0
    %v257 = vld [vmem:[%s2] sm:$0xff]
    %v258 = vld [vmem:[%s2 + $0x8] sm:$0xff]
    %260 = vset.pattern.permute.xlu0 0
    %261 = vperm.xlu0 %260, %v257
    %v262 = vpop.permute.xlu0 %261
    %265 = vset.pattern.permute.xlu0 0
    %266 = vperm.xlu0 %265, %v258
    %v267 = vpop.permute.xlu0 %266
    %v269 = vmul.f32 %v206, %v262
    %v270 = vmul.f32 %v208, %v262
    %v271 = vmul.f32 %v249, %v262
    %v272 = vmul.f32 %v251, %v262
    %v273 = vmul.f32 %v210, %v267
    %v274 = vmul.f32 %v212, %v267
    %v275 = vmul.f32 %v253, %v267
    %v276 = vmul.f32 %v255, %v267
    %v277 = vld [vmem:[%s3] sm:$0xff]
    %v278 = vld [vmem:[%s3 + $0x8] sm:$0xff]
    %280 = vset.pattern.permute.xlu0 0
    %281 = vperm.xlu0 %280, %v277
    %v282 = vpop.permute.xlu0 %281
    %285 = vset.pattern.permute.xlu0 0
    %286 = vperm.xlu0 %285, %v278
    %v287 = vpop.permute.xlu0 %286
    %v289 = vadd.f32 %v269, %v282
    %v290 = vadd.f32 %v270, %v282
    %v291 = vadd.f32 %v271, %v282
    %v292 = vadd.f32 %v272, %v282
    %v293 = vadd.f32 %v273, %v287
    %v294 = vadd.f32 %v274, %v287
    %v295 = vadd.f32 %v275, %v287
    %v296 = vadd.f32 %v276, %v287
    %v297 = vmax.f32 %v289, 0.0
    %v298 = vmax.f32 %v290, 0.0
    %v299 = vmax.f32 %v291, 0.0
    %v300 = vmax.f32 %v292, 0.0
    %v301 = vmax.f32 %v293, 0.0
    %v302 = vmax.f32 %v294, 0.0
    %v303 = vmax.f32 %v295, 0.0
    %v304 = vmax.f32 %v296, 0.0
    %s305 = scalar_lea.vmem %s1, 8
    %v306 = vld [vmem:[%s305] sm:$0xf]
    %v307 = vld [vmem:[%s305 + $0x4] sm:$0xf]
    %v310 = vunpack.c.l.b16 %v306
    %v311 = vunpack.c.l.b16 %v307
    %v312 = vpack.c.b16 %v311, %v310
    %v314 = vsel %vm167, %v312, 0
    %316 = vmatprep.subr.bf16.mxu0 %v53
    %317 = vmatpush1.bf16.msra.mxu0 %v52
    %318 = vmatprep.subr.bf16.mxu0 %v105
    %319 = vmatpush1.bf16.msra.mxu0 %v104
    %320 = vmatprep.subr.bf16.mxu0 %v147
    %321 = vmatpush1.bf16.msra.mxu0 %v146
    %322 = vmatprep.subr.bf16.mxu0 0
    %323 = vmatpush1.bf16.msra.mxu0 0
    %324 = vmatprep.subr.bf16.mxu0 0
    %325 = vmatpush1.bf16.msra.mxu0 0
    %326 = vmatprep.subr.bf16.mxu0 0
    %327 = vmatpush1.bf16.msra.mxu0 0
    %328 = vmatprep.subr.bf16.mxu0 0
    %329 = vmatpush1.bf16.msra.mxu0 0
    %330 = vmatprep.subr.bf16.mxu0 0
    %331 = vmatpush1.bf16.msra.mxu0 0
    %332 = vmatprep.subr.bf16.mxu0 0
    %333 = vmatpush1.bf16.msra.mxu0 0
    %334 = vmatprep.subr.bf16.mxu0 0
    %335 = vmatpush1.bf16.msra.mxu0 0
    %336 = vmatprep.subr.bf16.mxu0 0
    %337 = vmatpush1.bf16.msra.mxu0 0
    %338 = vmatprep.subr.bf16.mxu0 0
    %339 = vmatpush1.bf16.msra.mxu0 0
    %340 = vmatprep.subr.bf16.mxu0 0
    %341 = vmatpush1.bf16.msra.mxu0 0
    %342 = vmatprep.subr.bf16.mxu0 0
    %343 = vmatpush1.bf16.msra.mxu0 0
    %344 = vmatprep.subr.bf16.mxu0 0
    %345 = vmatpush1.bf16.msra.mxu0 0
    %346 = vmatprep.subr.bf16.mxu0 0
    %347 = vmatpush1.bf16.msra.mxu0 0
    %348 = vmatprep.mubr.bf16.mxu0 0
    %349 = vmatmul.mubr.bf16.gmra.mrb[0].mxu0 %v314
    %v350 = vpop.f32.mrb[0].mxu0
    %v351 = vadd.f32 0.0, %v350
    %v352 = vpop.f32.mrb[0].mxu0
    %v353 = vadd.f32 0.0, %v352
    %v354 = vpop.f32.mrb[0].mxu0
    %v355 = vadd.f32 0.0, %v354
    %v356 = vpop.f32.mrb[0].mxu0
    %v357 = vadd.f32 0.0, %v356
    %358 = vdwg.mxu0
    %359 = vmatprep.subr.bf16.mxu0 %v63
    %360 = vmatpush1.bf16.msra.mxu0 %v62
    %361 = vmatprep.subr.bf16.mxu0 %v115
    %362 = vmatpush1.bf16.msra.mxu0 %v114
    %363 = vmatprep.subr.bf16.mxu0 %v157
    %364 = vmatpush1.bf16.msra.mxu0 %v156
    %365 = vmatprep.subr.bf16.mxu0 0
    %366 = vmatpush1.bf16.msra.mxu0 0
    %367 = vmatprep.subr.bf16.mxu0 0
    %368 = vmatpush1.bf16.msra.mxu0 0
    %369 = vmatprep.subr.bf16.mxu0 0
    %370 = vmatpush1.bf16.msra.mxu0 0
    %371 = vmatprep.subr.bf16.mxu0 0
    %372 = vmatpush1.bf16.msra.mxu0 0
    %373 = vmatprep.subr.bf16.mxu0 0
    %374 = vmatpush1.bf16.msra.mxu0 0
    %375 = vmatprep.subr.bf16.mxu0 0
    %376 = vmatpush1.bf16.msra.mxu0 0
    %377 = vmatprep.subr.bf16.mxu0 0
    %378 = vmatpush1.bf16.msra.mxu0 0
    %379 = vmatprep.subr.bf16.mxu0 0
    %380 = vmatpush1.bf16.msra.mxu0 0
    %381 = vmatprep.subr.bf16.mxu0 0
    %382 = vmatpush1.bf16.msra.mxu0 0
    %383 = vmatprep.subr.bf16.mxu0 0
    %384 = vmatpush1.bf16.msra.mxu0 0
    %385 = vmatprep.subr.bf16.mxu0 0
    %386 = vmatpush1.bf16.msra.mxu0 0
    %387 = vmatprep.subr.bf16.mxu0 0
    %388 = vmatpush1.bf16.msra.mxu0 0
    %389 = vmatprep.subr.bf16.mxu0 0
    %390 = vmatpush1.bf16.msra.mxu0 0
    %391 = vmatprep.mubr.bf16.mxu0 0
    %392 = vmatmul.mubr.bf16.gmra.mrb[0].mxu0 %v314
    %v393 = vpop.f32.mrb[0].mxu0
    %v394 = vadd.f32 0.0, %v393
    %v395 = vpop.f32.mrb[0].mxu0
    %v396 = vadd.f32 0.0, %v395
    %v397 = vpop.f32.mrb[0].mxu0
    %v398 = vadd.f32 0.0, %v397
    %v399 = vpop.f32.mrb[0].mxu0
    %v400 = vadd.f32 0.0, %v399
    %401 = vdwg.mxu0
    %s402 = scalar_lea.vmem %s2, 16
    %v403 = vld [vmem:[%s402] sm:$0xff]
    %v404 = vld [vmem:[%s402 + $0x8] sm:$0xff]
    %406 = vset.pattern.permute.xlu0 0
    %407 = vperm.xlu0 %406, %v403
    %v408 = vpop.permute.xlu0 %407
    %411 = vset.pattern.permute.xlu0 0
    %412 = vperm.xlu0 %411, %v404
    %v413 = vpop.permute.xlu0 %412
    %v415 = vmul.f32 %v351, %v408
    %v416 = vmul.f32 %v353, %v408
    %v417 = vmul.f32 %v394, %v408
    %v418 = vmul.f32 %v396, %v408
    %v419 = vmul.f32 %v355, %v413
    %v420 = vmul.f32 %v357, %v413
    %v421 = vmul.f32 %v398, %v413
    %v422 = vmul.f32 %v400, %v413
    %s423 = scalar_lea.vmem %s3, 16
    %v424 = vld [vmem:[%s423] sm:$0xff]
    %v425 = vld [vmem:[%s423 + $0x8] sm:$0xff]
    %427 = vset.pattern.permute.xlu0 0
    %428 = vperm.xlu0 %427, %v424
    %v429 = vpop.permute.xlu0 %428
    %432 = vset.pattern.permute.xlu0 0
    %433 = vperm.xlu0 %432, %v425
    %v434 = vpop.permute.xlu0 %433
    %v436 = vadd.f32 %v415, %v429
    %v437 = vadd.f32 %v416, %v429
    %v438 = vadd.f32 %v417, %v429
    %v439 = vadd.f32 %v418, %v429
    %v440 = vadd.f32 %v419, %v434
    %v441 = vadd.f32 %v420, %v434
    %v442 = vadd.f32 %v421, %v434
    %v443 = vadd.f32 %v422, %v434
    %v444 = vmax.f32 %v436, 0.0
    %v445 = vmax.f32 %v437, 0.0
    %v446 = vmax.f32 %v438, 0.0
    %v447 = vmax.f32 %v439, 0.0
    %v448 = vmax.f32 %v440, 0.0
    %v449 = vmax.f32 %v441, 0.0
    %v450 = vmax.f32 %v442, 0.0
    %v451 = vmax.f32 %v443, 0.0
    %v452 = vadd.f32 %v297, %v444
    %v453 = vadd.f32 %v298, %v445
    %v454 = vadd.f32 %v299, %v446
    %v455 = vadd.f32 %v300, %v447
    %v456 = vadd.f32 %v301, %v448
    %v457 = vadd.f32 %v302, %v449
    %v458 = vadd.f32 %v303, %v450
    %v459 = vadd.f32 %v304, %v451
    %v460 = vld [vmem:[%s4] sm:$0xff]
    %v461 = vld [vmem:[%s4 + $0x8] sm:$0xff]
    %v462 = vld [vmem:[%s4 + $0x10] sm:$0xff]
    %v463 = vld [vmem:[%s4 + $0x18] sm:$0xff]
    %v464 = vld [vmem:[%s4 + $0x20] sm:$0xff]
    %v465 = vld [vmem:[%s4 + $0x28] sm:$0xff]
    %v466 = vld [vmem:[%s4 + $0x30] sm:$0xff]
    %v467 = vld [vmem:[%s4 + $0x38] sm:$0xff]
    %v468 = vld [vmem:[%s4 + $0x40] sm:$0xff]
    %v469 = vld [vmem:[%s4 + $0x48] sm:$0xff]
    %v470 = vld [vmem:[%s4 + $0x50] sm:$0xff]
    %v471 = vld [vmem:[%s4 + $0x58] sm:$0xff]
    %v472 = vld [vmem:[%s4 + $0x60] sm:$0xff]
    %v473 = vld [vmem:[%s4 + $0x68] sm:$0xff]
    %v474 = vld [vmem:[%s4 + $0x70] sm:$0xff]
    %v475 = vld [vmem:[%s4 + $0x78] sm:$0xff]
    %v476 = vld [vmem:[%s4 + $0x80] sm:$0xff]
    %v477 = vld [vmem:[%s4 + $0x88] sm:$0xff]
    %v478 = vld [vmem:[%s4 + $0x90] sm:$0xff]
    %v479 = vld [vmem:[%s4 + $0x98] sm:$0xff]
    %v480 = vld [vmem:[%s4 + $0xa0] sm:$0xff]
    %v481 = vld [vmem:[%s4 + $0xa8] sm:$0xff]
    %v482 = vld [vmem:[%s4 + $0xb0] sm:$0xff]
    %v483 = vld [vmem:[%s4 + $0xb8] sm:$0xff]
    %v484 = vld [vmem:[%s4 + $0xc0] sm:$0xff]
    %v485 = vld [vmem:[%s4 + $0xc8] sm:$0xff]
    %v486 = vld [vmem:[%s4 + $0xd0] sm:$0xff]
    %v487 = vld [vmem:[%s4 + $0xd8] sm:$0xff]
    %v488 = vld [vmem:[%s4 + $0xe0] sm:$0xff]
    %v489 = vld [vmem:[%s4 + $0xe8] sm:$0xff]
    %v490 = vld [vmem:[%s4 + $0xf0] sm:$0xff]
    %v491 = vld [vmem:[%s4 + $0xf8] sm:$0xff]
    %v492 = vld [vmem:[%s4 + $0x100] sm:$0xff]
    %v493 = vld [vmem:[%s4 + $0x108] sm:$0xff]
    %v494 = vld [vmem:[%s4 + $0x110] sm:$0xff]
    %v495 = vld [vmem:[%s4 + $0x118] sm:$0xff]
    %v496 = vld [vmem:[%s4 + $0x120] sm:$0xff]
    %v497 = vld [vmem:[%s4 + $0x128] sm:$0xff]
    %v498 = vld [vmem:[%s4 + $0x130] sm:$0xff]
    %v499 = vld [vmem:[%s4 + $0x138] sm:$0xff]
    %v500 = vld [vmem:[%s4 + $0x140] sm:$0xff]
    %v501 = vld [vmem:[%s4 + $0x148] sm:$0xff]
    %v502 = vld [vmem:[%s4 + $0x150] sm:$0xff]
    %v503 = vld [vmem:[%s4 + $0x158] sm:$0xff]
    %v504 = vld [vmem:[%s4 + $0x160] sm:$0xff]
    %v505 = vld [vmem:[%s4 + $0x168] sm:$0xff]
    %v506 = vld [vmem:[%s4 + $0x170] sm:$0xff]
    %v507 = vld [vmem:[%s4 + $0x178] sm:$0xff]
    %v508 = vld [vmem:[%s4 + $0x180] sm:$0xff]
    %v509 = vld [vmem:[%s4 + $0x188] sm:$0xff]
    %v510 = vld [vmem:[%s4 + $0x190] sm:$0xff]
    %v511 = vld [vmem:[%s4 + $0x198] sm:$0xff]
    %v512 = vld [vmem:[%s4 + $0x1a0] sm:$0xff]
    %v513 = vld [vmem:[%s4 + $0x1a8] sm:$0xff]
    %v514 = vld [vmem:[%s4 + $0x1b0] sm:$0xff]
    %v515 = vld [vmem:[%s4 + $0x1b8] sm:$0xff]
    %v516 = vld [vmem:[%s4 + $0x1c0] sm:$0xff]
    %v517 = vld [vmem:[%s4 + $0x1c8] sm:$0xff]
    %v518 = vld [vmem:[%s4 + $0x1d0] sm:$0xff]
    %v519 = vld [vmem:[%s4 + $0x1d8] sm:$0xff]
    %v520 = vld [vmem:[%s4 + $0x1e0] sm:$0xff]
    %v521 = vld [vmem:[%s4 + $0x1e8] sm:$0xff]
    %v522 = vld [vmem:[%s4 + $0x1f0] sm:$0xff]
    %v523 = vld [vmem:[%s4 + $0x1f8] sm:$0xff]
    %524 = vmatprep.subr.mxu0 0.0
    %525 = vmatpush1.msra.mxu0 %v460
    %526 = vmatprep.subr.mxu0 0.0
    %527 = vmatpush1.msra.mxu0 %v461
    %528 = vmatprep.subr.mxu0 0.0
    %529 = vmatpush1.msra.mxu0 %v462
    %530 = vmatprep.subr.mxu0 0.0
    %531 = vmatpush1.msra.mxu0 %v463
    %532 = vmatprep.subr.mxu0 0.0
    %533 = vmatpush1.msra.mxu0 %v464
    %534 = vmatprep.subr.mxu0 0.0
    %535 = vmatpush1.msra.mxu0 %v465
    %536 = vmatprep.subr.mxu0 0.0
    %537 = vmatpush1.msra.mxu0 %v466
    %538 = vmatprep.subr.mxu0 0.0
    %539 = vmatpush1.msra.mxu0 %v467
    %540 = vmatprep.subr.mxu0 0.0
    %541 = vmatpush1.msra.mxu0 %v468
    %542 = vmatprep.subr.mxu0 0.0
    %543 = vmatpush1.msra.mxu0 %v469
    %544 = vmatprep.subr.mxu0 0.0
    %545 = vmatpush1.msra.mxu0 %v470
    %546 = vmatprep.subr.mxu0 0.0
    %547 = vmatpush1.msra.mxu0 %v471
    %548 = vmatprep.subr.mxu0 0.0
    %549 = vmatpush1.msra.mxu0 %v472
    %550 = vmatprep.subr.mxu0 0.0
    %551 = vmatpush1.msra.mxu0 %v473
    %552 = vmatprep.subr.mxu0 0.0
    %553 = vmatpush1.msra.mxu0 %v474
    %554 = vmatprep.subr.mxu0 0.0
    %555 = vmatpush1.msra.mxu0 %v475
    %556 = vmatprep.subr.mxu0 0.0
    %557 = vmatpush1.msra.mxu0 %v476
    %558 = vmatprep.subr.mxu0 0.0
    %559 = vmatpush1.msra.mxu0 %v477
    %560 = vmatprep.subr.mxu0 0.0
    %561 = vmatpush1.msra.mxu0 %v478
    %562 = vmatprep.subr.mxu0 0.0
    %563 = vmatpush1.msra.mxu0 %v479
    %564 = vmatprep.subr.mxu0 0.0
    %565 = vmatpush1.msra.mxu0 %v480
    %566 = vmatprep.subr.mxu0 0.0
    %567 = vmatpush1.msra.mxu0 %v481
    %568 = vmatprep.subr.mxu0 0.0
    %569 = vmatpush1.msra.mxu0 %v482
    %570 = vmatprep.subr.mxu0 0.0
    %571 = vmatpush1.msra.mxu0 %v483
    %572 = vmatprep.subr.mxu0 0.0
    %573 = vmatpush1.msra.mxu0 %v484
    %574 = vmatprep.subr.mxu0 0.0
    %575 = vmatpush1.msra.mxu0 %v485
    %576 = vmatprep.subr.mxu0 0.0
    %577 = vmatpush1.msra.mxu0 %v486
    %578 = vmatprep.subr.mxu0 0.0
    %579 = vmatpush1.msra.mxu0 %v487
    %580 = vmatprep.subr.mxu0 0.0
    %581 = vmatpush1.msra.mxu0 %v488
    %582 = vmatprep.subr.mxu0 0.0
    %583 = vmatpush1.msra.mxu0 %v489
    %584 = vmatprep.subr.mxu0 0.0
    %585 = vmatpush1.msra.mxu0 %v490
    %586 = vmatprep.subr.mxu0 0.0
    %587 = vmatpush1.msra.mxu0 %v491
    %588 = vmatprep.mubr.f32.mxu0 %v453
    %589 = vmatmul.mubr.f32.gmra.mrb[0].mxu0 %v452
    %v590 = vpop.f32.mrb[0].mxu0
    %v591 = vadd.f32 0.0, %v590
    %v592 = vpop.f32.mrb[0].mxu0
    %593 = vmatprep.mubr.f32.mxu0 %v457
    %594 = vmatmul.mubr.f32.gmra.mrb[0].mxu0 %v456
    %v595 = vpop.f32.mrb[0].mxu0
    %v596 = vadd.f32 0.0, %v595
    %v597 = vpop.f32.mrb[0].mxu0
    %598 = vdwg.mxu0
    %599 = vmatprep.subr.mxu0 0.0
    %600 = vmatpush1.msra.mxu0 %v492
    %601 = vmatprep.subr.mxu0 0.0
    %602 = vmatpush1.msra.mxu0 %v493
    %603 = vmatprep.subr.mxu0 0.0
    %604 = vmatpush1.msra.mxu0 %v494
    %605 = vmatprep.subr.mxu0 0.0
    %606 = vmatpush1.msra.mxu0 %v495
    %607 = vmatprep.subr.mxu0 0.0
    %608 = vmatpush1.msra.mxu0 %v496
    %609 = vmatprep.subr.mxu0 0.0
    %610 = vmatpush1.msra.mxu0 %v497
    %611 = vmatprep.subr.mxu0 0.0
    %612 = vmatpush1.msra.mxu0 %v498
    %613 = vmatprep.subr.mxu0 0.0
    %614 = vmatpush1.msra.mxu0 %v499
    %615 = vmatprep.subr.mxu0 0.0
    %616 = vmatpush1.msra.mxu0 %v500
    %617 = vmatprep.subr.mxu0 0.0
    %618 = vmatpush1.msra.mxu0 %v501
    %619 = vmatprep.subr.mxu0 0.0
    %620 = vmatpush1.msra.mxu0 %v502
    %621 = vmatprep.subr.mxu0 0.0
    %622 = vmatpush1.msra.mxu0 %v503
    %623 = vmatprep.subr.mxu0 0.0
    %624 = vmatpush1.msra.mxu0 %v504
    %625 = vmatprep.subr.mxu0 0.0
    %626 = vmatpush1.msra.mxu0 %v505
    %627 = vmatprep.subr.mxu0 0.0
    %628 = vmatpush1.msra.mxu0 %v506
    %629 = vmatprep.subr.mxu0 0.0
    %630 = vmatpush1.msra.mxu0 %v507
    %631 = vmatprep.subr.mxu0 0.0
    %632 = vmatpush1.msra.mxu0 %v508
    %633 = vmatprep.subr.mxu0 0.0
    %634 = vmatpush1.msra.mxu0 %v509
    %635 = vmatprep.subr.mxu0 0.0
    %636 = vmatpush1.msra.mxu0 %v510
    %637 = vmatprep.subr.mxu0 0.0
    %638 = vmatpush1.msra.mxu0 %v511
    %639 = vmatprep.subr.mxu0 0.0
    %640 = vmatpush1.msra.mxu0 %v512
    %641 = vmatprep.subr.mxu0 0.0
    %642 = vmatpush1.msra.mxu0 %v513
    %643 = vmatprep.subr.mxu0 0.0
    %644 = vmatpush1.msra.mxu0 %v514
    %645 = vmatprep.subr.mxu0 0.0
    %646 = vmatpush1.msra.mxu0 %v515
    %647 = vmatprep.subr.mxu0 0.0
    %648 = vmatpush1.msra.mxu0 %v516
    %649 = vmatprep.subr.mxu0 0.0
    %650 = vmatpush1.msra.mxu0 %v517
    %651 = vmatprep.subr.mxu0 0.0
    %652 = vmatpush1.msra.mxu0 %v518
    %653 = vmatprep.subr.mxu0 0.0
    %654 = vmatpush1.msra.mxu0 %v519
    %655 = vmatprep.subr.mxu0 0.0
    %656 = vmatpush1.msra.mxu0 %v520
    %657 = vmatprep.subr.mxu0 0.0
    %658 = vmatpush1.msra.mxu0 %v521
    %659 = vmatprep.subr.mxu0 0.0
    %660 = vmatpush1.msra.mxu0 %v522
    %661 = vmatprep.subr.mxu0 0.0
    %662 = vmatpush1.msra.mxu0 %v523
    %663 = vmatprep.mubr.f32.mxu0 %v455
    %664 = vmatmul.mubr.f32.gmra.mrb[0].mxu0 %v454
    %v665 = vpop.f32.mrb[0].mxu0
    %v666 = vadd.f32 %v591, %v665
    %v667 = vpop.f32.mrb[0].mxu0
    %668 = vmatprep.mubr.f32.mxu0 %v459
    %669 = vmatmul.mubr.f32.gmra.mrb[0].mxu0 %v458
    %v670 = vpop.f32.mrb[0].mxu0
    %v671 = vadd.f32 %v596, %v670
    %v672 = vpop.f32.mrb[0].mxu0
    %673 = vdwg.mxu0
    %v674 = vld [vmem:[%s5] sm:$0xff]
    %vm675 = vcmask 130048
    %v677 = vsel %vm675, %v674, 0
    %679 = vmatprep.subr.mxu0 0.0
    %680 = vmatpush1.msra.mxu0 %v666
    %681 = vmatprep.subr.mxu0 0.0
    %682 = vmatpush1.msra.mxu0 %v671
    %683 = vmatprep.subr.mxu0 0.0
    %684 = vmatpush1.msra.mxu0 0.0
    %685 = vmatprep.subr.mxu0 0.0
    %686 = vmatpush1.msra.mxu0 0.0
    %687 = vmatprep.subr.mxu0 0.0
    %688 = vmatpush1.msra.mxu0 0.0
    %689 = vmatprep.subr.mxu0 0.0
    %690 = vmatpush1.msra.mxu0 0.0
    %691 = vmatprep.subr.mxu0 0.0
    %692 = vmatpush1.msra.mxu0 0.0
    %693 = vmatprep.subr.mxu0 0.0
    %694 = vmatpush1.msra.mxu0 0.0
    %695 = vmatprep.subr.mxu0 0.0
    %696 = vmatpush1.msra.mxu0 0.0
    %697 = vmatprep.subr.mxu0 0.0
    %698 = vmatpush1.msra.mxu0 0.0
    %699 = vmatprep.subr.mxu0 0.0
    %700 = vmatpush1.msra.mxu0 0.0
    %701 = vmatprep.subr.mxu0 0.0
    %702 = vmatpush1.msra.mxu0 0.0
    %703 = vmatprep.subr.mxu0 0.0
    %704 = vmatpush1.msra.mxu0 0.0
    %705 = vmatprep.subr.mxu0 0.0
    %706 = vmatpush1.msra.mxu0 0.0
    %707 = vmatprep.subr.mxu0 0.0
    %708 = vmatpush1.msra.mxu0 0.0
    %709 = vmatprep.subr.mxu0 0.0
    %710 = vmatpush1.msra.mxu0 0.0
    %711 = vmatprep.subr.mxu0 0.0
    %712 = vmatpush1.msra.mxu0 0.0
    %713 = vmatprep.subr.mxu0 0.0
    %714 = vmatpush1.msra.mxu0 0.0
    %715 = vmatprep.subr.mxu0 0.0
    %716 = vmatpush1.msra.mxu0 0.0
    %717 = vmatprep.subr.mxu0 0.0
    %718 = vmatpush1.msra.mxu0 0.0
    %719 = vmatprep.subr.mxu0 0.0
    %720 = vmatpush1.msra.mxu0 0.0
    %721 = vmatprep.subr.mxu0 0.0
    %722 = vmatpush1.msra.mxu0 0.0
    %723 = vmatprep.subr.mxu0 0.0
    %724 = vmatpush1.msra.mxu0 0.0
    %725 = vmatprep.subr.mxu0 0.0
    %726 = vmatpush1.msra.mxu0 0.0
    %727 = vmatprep.subr.mxu0 0.0
    %728 = vmatpush1.msra.mxu0 0.0
    %729 = vmatprep.subr.mxu0 0.0
    %730 = vmatpush1.msra.mxu0 0.0
    %731 = vmatprep.subr.mxu0 0.0
    %732 = vmatpush1.msra.mxu0 0.0
    %733 = vmatprep.subr.mxu0 0.0
    %734 = vmatpush1.msra.mxu0 0.0
    %735 = vmatprep.subr.mxu0 0.0
    %736 = vmatpush1.msra.mxu0 0.0
    %737 = vmatprep.subr.mxu0 0.0
    %738 = vmatpush1.msra.mxu0 0.0
    %739 = vmatprep.subr.mxu0 0.0
    %740 = vmatpush1.msra.mxu0 0.0
    %741 = vmatprep.subr.mxu0 0.0
    %742 = vmatpush1.msra.mxu0 0.0
    %743 = vmatprep.mubr.f32.mxu0 0.0
    %744 = vmatmul.mubr.f32.gmra.mrb[0].mxu0 %v677
    %v745 = vpop.f32.mrb[0].mxu0
    %v746 = vadd.f32 0.0, %v745
    %v747 = vpop.f32.mrb[0].mxu0
    %748 = vdwg.mxu0
    %v749 = vld [vmem:[%s6] sm:$0xff]
    %751 = vset.pattern.permute.xlu0 0
    %752 = vperm.xlu0 %751, %v749
    %v753 = vpop.permute.xlu0 %752
    %v755 = vmul.f32 %v746, %v753
    %v756 = vld [vmem:[%s7] sm:$0xff]
    %758 = vset.pattern.permute.xlu0 0
    %759 = vperm.xlu0 %758, %v756
    %v760 = vpop.permute.xlu0 %759
    %v762 = vadd.f32 %v755, %v760
    %v763 = vmax.f32 %v762, 0.0
    %v764 = vld [vmem:[%s8] sm:$0xff]
    %v765 = vld [vmem:[%s8 + $0x8] sm:$0xff]
    %v766 = vld [vmem:[%s8 + $0x10] sm:$0xff]
    %v767 = vld [vmem:[%s8 + $0x18] sm:$0xff]
    %v768 = vld [vmem:[%s9] sm:$0xff]
    %v769 = vld [vmem:[%s9 + $0x8] sm:$0xff]
    %v770 = vld [vmem:[%s9 + $0x10] sm:$0xff]
    %v771 = vld [vmem:[%s9 + $0x18] sm:$0xff]
    %773 = vset.pattern.permute.xlu0 0
    %774 = vperm.xlu0 %773, %v768
    %v775 = vpop.permute.xlu0 %774
    %778 = vset.pattern.permute.xlu0 0
    %779 = vperm.xlu0 %778, %v769
    %v780 = vpop.permute.xlu0 %779
    %783 = vset.pattern.permute.xlu0 0
    %784 = vperm.xlu0 %783, %v770
    %v785 = vpop.permute.xlu0 %784
    %788 = vset.pattern.permute.xlu0 0
    %789 = vperm.xlu0 %788, %v771
    %v790 = vpop.permute.xlu0 %789
    %vm792 = vcmask 64512
    %v794 = vsel %vm792, %v764, 0
    %v797 = vsel %vm792, %v765, 0
    %v800 = vsel %vm792, %v766, 0
    %v803 = vsel %vm792, %v767, 0
    %805 = vmatprep.subr.mxu0 0.0
    %806 = vmatpush1.msra.mxu0 %v763
    %807 = vmatprep.subr.mxu0 0.0
    %808 = vmatpush1.msra.mxu0 0.0
    %809 = vmatprep.subr.mxu0 0.0
    %810 = vmatpush1.msra.mxu0 0.0
    %811 = vmatprep.subr.mxu0 0.0
    %812 = vmatpush1.msra.mxu0 0.0
    %813 = vmatprep.subr.mxu0 0.0
    %814 = vmatpush1.msra.mxu0 0.0
    %815 = vmatprep.subr.mxu0 0.0
    %816 = vmatpush1.msra.mxu0 0.0
    %817 = vmatprep.subr.mxu0 0.0
    %818 = vmatpush1.msra.mxu0 0.0
    %819 = vmatprep.subr.mxu0 0.0
    %820 = vmatpush1.msra.mxu0 0.0
    %821 = vmatprep.subr.mxu0 0.0
    %822 = vmatpush1.msra.mxu0 0.0
    %823 = vmatprep.subr.mxu0 0.0
    %824 = vmatpush1.msra.mxu0 0.0
    %825 = vmatprep.subr.mxu0 0.0
    %826 = vmatpush1.msra.mxu0 0.0
    %827 = vmatprep.subr.mxu0 0.0
    %828 = vmatpush1.msra.mxu0 0.0
    %829 = vmatprep.subr.mxu0 0.0
    %830 = vmatpush1.msra.mxu0 0.0
    %831 = vmatprep.subr.mxu0 0.0
    %832 = vmatpush1.msra.mxu0 0.0
    %833 = vmatprep.subr.mxu0 0.0
    %834 = vmatpush1.msra.mxu0 0.0
    %835 = vmatprep.subr.mxu0 0.0
    %836 = vmatpush1.msra.mxu0 0.0
    %837 = vmatprep.subr.mxu0 0.0
    %838 = vmatpush1.msra.mxu0 0.0
    %839 = vmatprep.subr.mxu0 0.0
    %840 = vmatpush1.msra.mxu0 0.0
    %841 = vmatprep.subr.mxu0 0.0
    %842 = vmatpush1.msra.mxu0 0.0
    %843 = vmatprep.subr.mxu0 0.0
    %844 = vmatpush1.msra.mxu0 0.0
    %845 = vmatprep.subr.mxu0 0.0
    %846 = vmatpush1.msra.mxu0 0.0
    %847 = vmatprep.subr.mxu0 0.0
    %848 = vmatpush1.msra.mxu0 0.0
    %849 = vmatprep.subr.mxu0 0.0
    %850 = vmatpush1.msra.mxu0 0.0
    %851 = vmatprep.subr.mxu0 0.0
    %852 = vmatpush1.msra.mxu0 0.0
    %853 = vmatprep.subr.mxu0 0.0
    %854 = vmatpush1.msra.mxu0 0.0
    %855 = vmatprep.subr.mxu0 0.0
    %856 = vmatpush1.msra.mxu0 0.0
    %857 = vmatprep.subr.mxu0 0.0
    %858 = vmatpush1.msra.mxu0 0.0
    %859 = vmatprep.subr.mxu0 0.0
    %860 = vmatpush1.msra.mxu0 0.0
    %861 = vmatprep.subr.mxu0 0.0
    %862 = vmatpush1.msra.mxu0 0.0
    %863 = vmatprep.subr.mxu0 0.0
    %864 = vmatpush1.msra.mxu0 0.0
    %865 = vmatprep.subr.mxu0 0.0
    %866 = vmatpush1.msra.mxu0 0.0
    %867 = vmatprep.subr.mxu0 0.0
    %868 = vmatpush1.msra.mxu0 0.0
    %869 = vmatprep.mubr.f32.mxu0 0.0
    %870 = vmatmul.mubr.f32.gmra.mrb[0].mxu0 %v794
    %v871 = vpop.f32.mrb[0].mxu0
    %v872 = vadd.f32 %v775, %v871
    %v873 = vpop.f32.mrb[0].mxu0
    %874 = vmatprep.mubr.f32.mxu0 0.0
    %875 = vmatmul.mubr.f32.gmra.mrb[0].mxu0 %v797
    %v876 = vpop.f32.mrb[0].mxu0
    %v877 = vadd.f32 %v780, %v876
    %v878 = vpop.f32.mrb[0].mxu0
    %879 = vmatprep.mubr.f32.mxu0 0.0
    %880 = vmatmul.mubr.f32.gmra.mrb[0].mxu0 %v800
    %v881 = vpop.f32.mrb[0].mxu0
    %v882 = vadd.f32 %v785, %v881
    %v883 = vpop.f32.mrb[0].mxu0
    %884 = vmatprep.mubr.f32.mxu0 0.0
    %885 = vmatmul.mubr.f32.gmra.mrb[0].mxu0 %v803
    %v886 = vpop.f32.mrb[0].mxu0
    %v887 = vadd.f32 %v790, %v886
    %v888 = vpop.f32.mrb[0].mxu0
    %889 = vdwg.mxu0
    %v890 = vmax.f32 %v872, %v882
    %v891 = vmax.f32 %v877, %v887
    %v892 = vsub.f32 %v872, %v890
    %v893 = vsub.f32 %v877, %v891
    %v894 = vmul.f32 %v892, 1.442695
    %v895 = vpow.pop %v894
    %v896 = vmul.f32 %v893, 1.442695
    %v897 = vpow.pop %v896
    %v898 = vsub.f32 %v882, %v890
    %v899 = vsub.f32 %v887, %v891
    %v900 = vmul.f32 %v898, 1.442695
    %v901 = vpow.pop %v900
    %v902 = vmul.f32 %v899, 1.442695
    %v903 = vpow.pop %v902
    %v904 = vadd.f32 %v895, %v901
    %v905 = vadd.f32 %v897, %v903
    %v906 = vrcp.pop %v904
    %v907 = vrcp.pop %v905
    %v908 = vmul.f32 %v895, %v906
    %v909 = vmul.f32 %v897, %v907
    %v910 = vmul.f32 %v901, %v906
    %v911 = vmul.f32 %v903, %v907
    %913 = vset.pattern.permute.xlu0 0
    %914 = vperm.xlu0 %913, %v908
    %v915 = vpop.permute.xlu0 %914
    %918 = vset.pattern.permute.xlu0 0
    %919 = vperm.xlu0 %918, %v909
    %v920 = vpop.permute.xlu0 %919
    %v922 = vmul.f32 %v297, %v915
    %v923 = vmul.f32 %v298, %v915
    %v924 = vmul.f32 %v301, %v920
    %v925 = vmul.f32 %v302, %v920
    %927 = vset.pattern.permute.xlu0 0
    %928 = vperm.xlu0 %927, %v910
    %v929 = vpop.permute.xlu0 %928
    %932 = vset.pattern.permute.xlu0 0
    %933 = vperm.xlu0 %932, %v911
    %v934 = vpop.permute.xlu0 %933
    %v936 = vmul.f32 %v444, %v929
    %v937 = vmul.f32 %v445, %v929
    %v938 = vmul.f32 %v448, %v934
    %v939 = vmul.f32 %v449, %v934
    %v940 = vadd.f32 %v922, %v936
    %v941 = vadd.f32 %v923, %v937
    %v942 = vadd.f32 %v924, %v938
    %v943 = vadd.f32 %v925, %v939
    %944 = vst [vmem:[#allocation2] sm:$0xff] %v940
    %945 = vst [vmem:[#allocation2 + $0x8] sm:$0xff] %v941
    %946 = vst [vmem:[#allocation2 + $0x10] sm:$0xff] %v942
    %947 = vst [vmem:[#allocation2 + $0x18] sm:$0xff] %v943
    %948 = vset.pattern.permute.xlu0 1
    %949 = vperm.xlu0 %948, %v908
    %v950 = vpop.permute.xlu0 %949
    %952 = vset.pattern.permute.xlu0 1
    %953 = vperm.xlu0 %952, %v909
    %v954 = vpop.permute.xlu0 %953
    %v956 = vmul.f32 %v299, %v950
    %v957 = vmul.f32 %v300, %v950
    %v958 = vmul.f32 %v303, %v954
    %v959 = vmul.f32 %v304, %v954
    %960 = vset.pattern.permute.xlu0 1
    %961 = vperm.xlu0 %960, %v910
    %v962 = vpop.permute.xlu0 %961
    %964 = vset.pattern.permute.xlu0 1
    %965 = vperm.xlu0 %964, %v911
    %v966 = vpop.permute.xlu0 %965
    %v968 = vmul.f32 %v446, %v962
    %v969 = vmul.f32 %v447, %v962
    %v970 = vmul.f32 %v450, %v966
    %v971 = vmul.f32 %v451, %v966
    %v972 = vadd.f32 %v956, %v968
    %v973 = vadd.f32 %v957, %v969
    %v974 = vadd.f32 %v958, %v970
    %v975 = vadd.f32 %v959, %v971
    %s976 = scalar_lea.vmem [#allocation2], 32
    %977 = vst [vmem:[%s976] sm:$0xff] %v972
    %978 = vst [vmem:[%s976 + $0x8] sm:$0xff] %v973
    %979 = vst [vmem:[%s976 + $0x10] sm:$0xff] %v974
    %980 = vst [vmem:[%s976 + $0x18] sm:$0xff] %v975
    // Predicated region
    $region42: #{tpu_custom_call.1} parent=1 // pred_check
      _
    $region43: #{tpu_custom_call.1} parent=1 // pred_check_branch
      %982 = sbr.rel (0) target = $region45
    $region44: #{tpu_custom_call.1} parent=1 // pred_region
      %s984 = ssub.s32 1024, 1024
      %985 = vsyncadd [#allocation3], %s984
      %s986 = sshll.u32 [#allocation2], 4
      %s987 = int_to_ptr.vmem [resolvable:$true] %s986
      %992 = dma.vmem_to_hbm [thread:$0]  %s987, 1024, %s10, [#allocation3], 256, 256, 16
    $region45: #{tpu_custom_call.1} parent=1 // pred_fallthru
      _
    // Predicated region
    $region46: #{tpu_custom_call.1} parent=1 // pred_check
      _
    $region47: #{tpu_custom_call.1} parent=1 // pred_check_branch
      %994 = sbr.rel (0) target = $region49
    $region48: #{tpu_custom_call.1} parent=1 // pred_region
      %995 = dma.done [#allocation3], 1024
    $region49: #{tpu_custom_call.1} parent=1 // pred_fallthru
      _
    %996 = vsyncpa [#allocation3], 1

</llo_original>
